<compile_context>
chip_gen: v6e
topology: v6e:2x2x1
jax: 0.10.0
libtpu: 0.0.40
codegen_flags: <defaults>
</compile_context>

<pallas_src>
import jax
import jax.numpy as jnp
from jax.experimental import pallas as pl
from jax.experimental.pallas import tpu as pltpu


def _round_up(x, m):
    return ((x + m - 1) // m) * m


def _cdiv(a, b):
    return -(-a // b)


# --------------------------------------------------------------------------- #
# Kernels
# --------------------------------------------------------------------------- #

def _pe_kernel_single_k(p_ref, w_ref, b_ref, o_ref):
    """n_k == 1 fast path: one (TM, K) @ (K, E) MXU pass, bias added, direct store.

    No accumulator scratch, no pl.when phases.  grid = (num_m_tiles,).
    """
    acc = jnp.dot(p_ref[...], w_ref[...], preferred_element_type=jnp.float32)
    o_ref[...] = (acc + b_ref[...].astype(jnp.float32)).astype(o_ref.dtype)


def _pe_kernel_multi_k(p_ref, w_ref, b_ref, o_ref, acc_ref):
    """General path: (TM, TK) @ (TK, E) with an f32 VMEM accumulator.

    grid = (num_m_tiles, num_k_tiles); K (reduction) is the innermost axis.
    """
    k = pl.program_id(1)

    @pl.when(k == 0)
    def _init():
        # Fold the bias into the accumulator init (once per M tile).
        acc_ref[...] = jnp.broadcast_to(
            b_ref[...].astype(jnp.float32), acc_ref.shape)

    acc_ref[...] += jnp.dot(p_ref[...], w_ref[...],
                            preferred_element_type=jnp.float32)

    @pl.when(k == pl.num_programs(1) - 1)
    def _store():
        o_ref[...] = acc_ref[...].astype(o_ref.dtype)


# --------------------------------------------------------------------------- #
# Wrapper
# --------------------------------------------------------------------------- #

def _pick_tm(M, tm_max):
    """M tile size: 8-aligned, >= 2 tiles when M allows (v7x 2-TC sharding),
    and preferring a divisor of M so the final out[:M] slice is a no-op."""
    tm_max = max(8, _round_up(tm_max, 8))
    tm = min(tm_max, _round_up(M, 8))
    if M > 8 and _cdiv(M, tm) < 2:
        tm = _round_up(_cdiv(M, 2), 8)
    if M % tm != 0:
        for cand in range(tm, max(tm // 2, 7), -8):
            if M % cand == 0:
                tm = cand
                break
    return tm


def patch_embed_forward(x, weight, bias, patch_size, *,
                        compute_dtype=jnp.bfloat16,
                        out_dtype=None,
                        tm=1024, max_tk=2048,
                        x_layout="NCHW",
                        return_tokens=False):
    """Patch embedding (Conv2d with kernel_size == stride == patch_size).

    x:      (B, C, H, W) if x_layout == "NCHW", else (B, H, W, C)
    weight: (E, C, p, p)   (PyTorch OIHW)
    bias:   (E,)
    Returns (B, E, H//p, W//p) (PyTorch layout) or, with return_tokens=True,
    the cheaper token-major view (B, nH*nW, E).
    """
    p = patch_size
    E = weight.shape[0]
    if out_dtype is None:
        out_dtype = compute_dtype
    max_tk = max(128, _round_up(max_tk, 128))

    if x_layout == "NCHW":
        B, C, H, W = x.shape
        nH, nW = H // p, W // p
        M, K = B * nH * nW, C * p * p
        # im2col: one fused transpose, emitted directly in bf16 (half the HBM
        # traffic of the materialized (M, K) patch matrix).  Patch flattening
        # order (C, kh, kw) matches the OIHW weight flattening below.
        patches = (
            x.astype(compute_dtype)
            .reshape(B, C, nH, p, nW, p)
            .transpose(0, 2, 4, 1, 3, 5)             # (B, nH, nW, C, p, p)
            .reshape(M, K)
        )
        w_mat = weight.reshape(E, K).T.astype(compute_dtype)          # (K, E)
    elif x_layout == "NHWC":
        # Cheaper patch shuffle (contiguous p*C rows); weight reordered to match
        # the (kh, kw, C) patch flattening.
        B, H, W, C = x.shape
        nH, nW = H // p, W // p
        M, K = B * nH * nW, C * p * p
        patches = (
            x.astype(compute_dtype)
            .reshape(B, nH, p, nW, p, C)
            .transpose(0, 1, 3, 2, 4, 5)             # (B, nH, nW, p, p, C)
            .reshape(M, K)
        )
        w_mat = weight.transpose(0, 2, 3, 1).reshape(E, K).T.astype(compute_dtype)
    else:
        raise ValueError(f"unknown x_layout {x_layout!r}")

    assert H % p == 0 and W % p == 0, "spatial dims must be divisible by patch_size"
    b_mat = bias.reshape(1, E).astype(jnp.float32)

    # --- tiling ---------------------------------------------------------------
    tm = _pick_tm(M, tm)
    m_pad = _round_up(M, tm)
    k_align = 256 if K > 128 else 128      # 256-wide MXU on v6e/v7x; 128 suffices below
    k_pad = _round_up(K, k_align)
    tk = k_pad if k_pad <= max_tk else max_tk
    k_pad = _round_up(k_pad, tk)

    if m_pad != M or k_pad != K:
        patches = jnp.pad(patches, ((0, m_pad - M), (0, k_pad - K)))
    if k_pad != K:
        w_mat = jnp.pad(w_mat, ((0, k_pad - K), (0, 0)))

    n_m, n_k = m_pad // tm, k_pad // tk
    single_k = (n_k == 1)

    # --- VMEM budget (double-buffered tiles; acc scratch only on multi-K path) -
    in_b = jnp.dtype(compute_dtype).itemsize
    out_b = jnp.dtype(out_dtype).itemsize
    est = (2 * tm * tk * in_b + 2 * tk * E * in_b
           + 2 * tm * E * out_b + 2 * E * 4
           + (0 if single_k else tm * E * 4))
    vmem_limit = min(max(int(1.5 * est), 32 * 1024 * 1024), 48 * 1024 * 1024)

    cost = pl.CostEstimate(
        flops=2 * m_pad * k_pad * E,
        transcendentals=0,
        bytes_accessed=(m_pad * k_pad * in_b + k_pad * E * in_b
                        + E * 4 + m_pad * E * out_b),
    )

    if single_k:
        out = pl.pallas_call(
            _pe_kernel_single_k,
            out_shape=jax.ShapeDtypeStruct((m_pad, E), out_dtype),
            grid=(n_m,),
            in_specs=[
                pl.BlockSpec((tm, tk), lambda m: (m, 0)),
                # Weight / bias index_maps ignore the M axis -> DMA'd once and
                # held VMEM-resident across all M tiles.
                pl.BlockSpec((tk, E), lambda m: (0, 0)),
                pl.BlockSpec((1, E), lambda m: (0, 0)),
            ],
            out_specs=pl.BlockSpec((tm, E), lambda m: (m, 0)),
            compiler_params=pltpu.CompilerParams(
                dimension_semantics=("parallel",),
                vmem_limit_bytes=vmem_limit,
            ),
            cost_estimate=cost,
        )(patches, w_mat, b_mat)
    else:
        out = pl.pallas_call(
            _pe_kernel_multi_k,
            out_shape=jax.ShapeDtypeStruct((m_pad, E), out_dtype),
            grid=(n_m, n_k),
            in_specs=[
                pl.BlockSpec((tm, tk), lambda m, k: (m, k)),
                pl.BlockSpec((tk, E), lambda m, k: (k, 0)),
                pl.BlockSpec((1, E), lambda m, k: (0, 0)),
            ],
            out_specs=pl.BlockSpec((tm, E), lambda m, k: (m, 0)),
            scratch_shapes=[pltpu.VMEM((tm, E), jnp.float32)],
            compiler_params=pltpu.CompilerParams(
                dimension_semantics=("parallel", "arbitrary"),
                vmem_limit_bytes=vmem_limit,
            ),
            cost_estimate=cost,
        )(patches, w_mat, b_mat)

    tokens = out[:M].reshape(B, nH * nW, E)   # no-op slice when tm | M
    if return_tokens:
        # Token-major, lane-dense E — what a transformer consumer wants; skips
        # the full extra HBM pass of the NCHW transpose below.
        return tokens
    # PyTorch Conv2d (NCHW) output layout, matching the module's forward.
    return tokens.reshape(B, nH, nW, E).transpose(0, 3, 1, 2)


# --------------------------------------------------------------------------- #
# Example / self-test
# --------------------------------------------------------------------------- #

if __name__ == "__main__":
    B, C, H, W = 2, 4, 16, 16
    patch_size = 4
    embed_dim = 32

    key = jax.random.PRNGKey(0)
    kx, kw, kb = jax.random.split(key, 3)

    x = jax.random.normal(kx, (B, C, H, W), dtype=jnp.float32)
    # Deterministic synthetic Conv2d parameters (shapes from nn.Conv2d(C, E, p, p)).
    weight = 0.02 * jax.random.normal(
        kw, (embed_dim, C, patch_size, patch_size), dtype=jnp.float32)
    bias = 0.02 * jax.random.normal(kb, (embed_dim,), dtype=jnp.float32)

    y = patch_embed_forward(x, weight, bias, patch_size)
    y = jax.block_until_ready(y)

    # Reference: XLA conv with the same semantics as PyTorch Conv2d (NCHW, f32).
    y_ref = jax.lax.conv_general_dilated(
        x, weight,
        window_strides=(patch_size, patch_size),
        padding="VALID",
        dimension_numbers=("NCHW", "OIHW", "NCHW"),
    ) + bias.reshape(1, embed_dim, 1, 1)

    assert y.shape == (B, embed_dim, H // patch_size, W // patch_size), y.shape
    # bf16 MXU inputs + bf16 output with f32 accumulation -> modest tolerance.
    y_f32 = y.astype(jnp.float32)
    max_err = float(jnp.max(jnp.abs(y_f32 - y_ref)))
    assert jnp.allclose(y_f32, y_ref, atol=2e-2, rtol=2e-2), max_err

    print("KERNEL_OK")
</pallas_src>

<mosaic_0001>
module attributes {stable_mosaic.version = 11 : i64} {
  func.func @_pe_kernel_single_k(%arg0: i32, %arg1: memref<16x128xbf16, #tpu.memory_space<vmem>>, %arg2: memref<128x32xbf16, #tpu.memory_space<vmem>>, %arg3: memref<1x32xf32, #tpu.memory_space<vmem>>, %arg4: memref<16x32xbf16, #tpu.memory_space<vmem>>) attributes {dimension_semantics = [#tpu.dimension_semantics<parallel>], iteration_bounds = array<i64: 2>, scalar_prefetch = 0 : i64, scratch_operands = 0 : i64, tpu.core_type = #tpu.core_type<tc>, window_params = [{transform_indices = @transform_0, window_bounds = array<i64: 16, 128>}, {pipeline_mode = #tpu.pipeline_mode<synchronous>, transform_indices = @transform_1, window_bounds = array<i64: 128, 32>}, {pipeline_mode = #tpu.pipeline_mode<synchronous>, transform_indices = @transform_2, window_bounds = array<i64: 1, 32>}, {transform_indices = @transform_3, window_bounds = array<i64: 16, 32>}]} {
    %c0 = arith.constant 0 : index
    %c0_0 = arith.constant 0 : index
    %0 = vector.load %arg1[%c0, %c0_0] : memref<16x128xbf16, #tpu.memory_space<vmem>>, vector<16x128xbf16>
    %c0_1 = arith.constant 0 : index
    %c0_2 = arith.constant 0 : index
    %1 = vector.load %arg2[%c0_1, %c0_2] : memref<128x32xbf16, #tpu.memory_space<vmem>>, vector<128x32xbf16>
    %cst = arith.constant dense<0.000000e+00> : vector<16x32xf32>
    %2 = tpu.matmul %0, %1, %cst {dimension_numbers = #tpu.dot_dimension_numbers<[1], [0], [0], [1], [0, 0, 1, 1], [], []>} : vector<16x128xbf16>, vector<128x32xbf16>, vector<16x32xf32> -> vector<16x32xf32>
    %c0_3 = arith.constant 0 : index
    %c0_4 = arith.constant 0 : index
    %3 = vector.load %arg3[%c0_3, %c0_4] : memref<1x32xf32, #tpu.memory_space<vmem>>, vector<1x32xf32>
    %4 = vector.broadcast %3 : vector<1x32xf32> to vector<16x32xf32>
    %5 = arith.addf %2, %4 : vector<16x32xf32>
    %6 = arith.truncf %5 : vector<16x32xf32> to vector<16x32xbf16>
    %c0_5 = arith.constant 0 : index
    %c0_6 = arith.constant 0 : index
    %7 = vector.load %arg4[%c0_5, %c0_6] : memref<16x32xbf16, #tpu.memory_space<vmem>>, vector<16x32xbf16>
    tpu.vector_store %arg4[%c0_5, %c0_6], %6 {strides = array<i32>} : memref<16x32xbf16, #tpu.memory_space<vmem>>, vector<16x32xbf16>,
    return
  }
  func.func @transform_0(%arg0: i32) -> (i32, i32) {
    %c0_i32 = arith.constant 0 : i32
    %c0_i32_0 = arith.constant 0 : i32
    return %arg0, %c0_i32 : i32, i32
  }
  func.func @transform_1(%arg0: i32) -> (i32, i32) {
    %c0_i32 = arith.constant 0 : i32
    %c0_i32_0 = arith.constant 0 : i32
    %c0_i32_1 = arith.constant 0 : i32
    return %c0_i32, %c0_i32_0 : i32, i32
  }
  func.func @transform_2(%arg0: i32) -> (i32, i32) {
    %c0_i32 = arith.constant 0 : i32
    %c0_i32_0 = arith.constant 0 : i32
    %c0_i32_1 = arith.constant 0 : i32
    return %c0_i32, %c0_i32_0 : i32, i32
  }
  func.func @transform_3(%arg0: i32) -> (i32, i32) {
    %c0_i32 = arith.constant 0 : i32
    %c0_i32_0 = arith.constant 0 : i32
    return %arg0, %c0_i32 : i32, i32
  }
}

</mosaic_0001>

<llo_original>
// kernel: tpu_custom_call.1
$region0: #{tpu_custom_call.1}
  #allocation0 [shape = 'u32[]', space=smem, size = 0x4, offset = 0x4, fixed_abs, tag = 'smem constant byte address 0x4 - core index']
  #allocation1 [shape = 'u32[144,128]{1,0:T(1,128)}', space=vmem, size = 0x12000, scoped, tag = 'internal scratch']
  %s0 = inlined_call_operand.vmem [shape: bf16[32,128], index: 0, kind: input, shape index: {}]
  %s1 = inlined_call_operand.vmem [shape: bf16[128,32], index: 1, kind: input, shape index: {}]
  %s2 = inlined_call_operand.vmem [shape: f32[1,32], index: 2, kind: input, shape index: {}]
  %s3 = inlined_call_operand.hbm [shape: bf16[32,32], index: 3, kind: output, shape index: {}]
  %s4 = sld [smem:[#allocation0]]
  $region45: #{tpu_custom_call.1} parent=0
    _
  %s6 = ssub.s32 1, %s4
  %s7 = scalar_select 0, %s6, %s4
  $region1: #{tpu_custom_call.1} parent=0
    #allocation2 [shape = 'u8[8192]{0}', space=vmem, size = 0x2000, scoped, tag = 'output window, operand 0']
    #allocation3 [shape = 's32[2]{0}', space=sflag, size = 0x8, scoped, tag = 'scoped memory for tpu_custom_call.1']
    %8 = vsyncpa [#allocation3], 0
    %s9 = scalar_lea.sflag [#allocation3], 1
    %10 = vsyncpa %s9, 0
    loop: start=0, step=1, limit=4
    $region2: #{tpu_custom_call.1} parent=1 // loop_pre_header
      _
    $region3: #{tpu_custom_call.1} parent=1 // loop_header
      %s12 = sphi 0, %s16
      %p13 = scmp.ge.s32.totalorder %s12, 4
      %s22 = sphi 0, %s24
      %s25 = sphi 0, %s22
      %s26 = sphi 0, %s25
      %s42 = sphi 0, %s26
      %s46 = sphi 0, %s46
      %s48 = sphi 0, %s46
      %s49 = sphi 0, %s48
      %s63 = sphi 0, %s49
      %s67 = sphi 0, %s67
      %s69 = sphi 0, %s67
      %s70 = sphi 0, %s69
      %s84 = sphi 0, %s70
      %s90 = sphi 0, %s92
      %s93 = sphi 0, %s90
      %s94 = sphi 0, %s93
      %s110 = sphi 0, %s94
    $region4: #{tpu_custom_call.1} parent=1 // loop_header_branch
      %15 = sbr.rel (%p13) target = $region8
    $region5: #{tpu_custom_call.1} parent=1 // loop_body
      %s17 = ssub.s32 %s12, 1
      %s18 = ssub.s32 %s12, 2
      %s19 = sadd.s32 %s12, 1
      %s20 = ssub.s32 %s12, %s19
      %p21 = scmp.eq.s32.totalorder %s20, 0
      %s23 = sadd.s32 %s22, 1
      %s24 = scalar_select %p21, %s22, %s23
      %p27 = pneg %p21
      %p28 = scmp.eq.s32.totalorder %s12, 1
      %p29 = por %p27, %p28
      %p30 = scmp.ne.s32.totalorder %s22, %s25
      %p31 = scmp.eq.s32.totalorder %s12, 0
      %p32 = por %p30, %p31
      %p33 = scmp.ne.s32.totalorder %s22, %s25
      %p34 = scmp.eq.s32.totalorder %s17, 1
      %p35 = por %p33, %p34
      %p36 = scmp.ne.s32.totalorder %s25, %s26
      %p37 = scmp.eq.s32.totalorder %s17, 0
      %p38 = por %p36, %p37
      %p39 = scmp.ne.s32.totalorder %s25, %s26
      %p40 = scmp.eq.s32.totalorder %s18, 1
      %p41 = por %p39, %p40
      %p43 = scmp.ne.s32.totalorder %s26, %s42
      %p44 = scmp.eq.s32.totalorder %s18, 0
      %p45 = por %p43, %p44
      %s47 = sadd.s32 %s46, 1
      %p50 = scmp.eq.s32.totalorder %s12, 1
      %p51 = scmp.ne.s32.totalorder %s46, %s48
      %p52 = scmp.eq.s32.totalorder %s12, 0
      %p53 = por %p51, %p52
      %p54 = scmp.ne.s32.totalorder %s46, %s48
      %p55 = scmp.eq.s32.totalorder %s17, 1
      %p56 = por %p54, %p55
      %p57 = scmp.ne.s32.totalorder %s48, %s49
      %p58 = scmp.eq.s32.totalorder %s17, 0
      %p59 = por %p57, %p58
      %p60 = scmp.ne.s32.totalorder %s48, %s49
      %p61 = scmp.eq.s32.totalorder %s18, 1
      %p62 = por %p60, %p61
      %p64 = scmp.ne.s32.totalorder %s49, %s63
      %p65 = scmp.eq.s32.totalorder %s18, 0
      %p66 = por %p64, %p65
      %s68 = sadd.s32 %s67, 1
      %p71 = scmp.eq.s32.totalorder %s12, 1
      %p72 = scmp.ne.s32.totalorder %s67, %s69
      %p73 = scmp.eq.s32.totalorder %s12, 0
      %p74 = por %p72, %p73
      %p75 = scmp.ne.s32.totalorder %s67, %s69
      %p76 = scmp.eq.s32.totalorder %s17, 1
      %p77 = por %p75, %p76
      %p78 = scmp.ne.s32.totalorder %s69, %s70
      %p79 = scmp.eq.s32.totalorder %s17, 0
      %p80 = por %p78, %p79
      %p81 = scmp.ne.s32.totalorder %s69, %s70
      %p82 = scmp.eq.s32.totalorder %s18, 1
      %p83 = por %p81, %p82
      %p85 = scmp.ne.s32.totalorder %s70, %s84
      %p86 = scmp.eq.s32.totalorder %s18, 0
      %p87 = por %p85, %p86
      %s88 = ssub.s32 %s12, %s19
      %p89 = scmp.eq.s32.totalorder %s88, 0
      %s91 = sadd.s32 %s90, 1
      %s92 = scalar_select %p89, %s90, %s91
      %p95 = pneg %p89
      %p96 = scmp.eq.s32.totalorder %s12, 1
      %p97 = por %p95, %p96
      %p98 = scmp.ne.s32.totalorder %s90, %s93
      %p99 = scmp.eq.s32.totalorder %s12, 0
      %p100 = por %p98, %p99
      %p101 = scmp.ne.s32.totalorder %s90, %s93
      %p102 = scmp.eq.s32.totalorder %s17, 1
      %p103 = por %p101, %p102
      %p104 = scmp.ne.s32.totalorder %s93, %s94
      %p105 = scmp.eq.s32.totalorder %s17, 0
      %p106 = por %p104, %p105
      %p107 = scmp.ne.s32.totalorder %s93, %s94
      %p108 = scmp.eq.s32.totalorder %s18, 1
      %p109 = por %p107, %p108
      %p111 = scmp.ne.s32.totalorder %s94, %s110
      %p112 = scmp.eq.s32.totalorder %s18, 0
      %p113 = por %p111, %p112
      %p114 = scmp.le.s32.totalorder 1, %s12
      %p115 = scmp.lt.s32.totalorder %s12, 3
      %p116 = pnand %p114, %p115
      %p117 = pneg %p116
      // Predicated region
      $region9: #{tpu_custom_call.1} parent=5 // pred_check
        _
      $region10: #{tpu_custom_call.1} parent=5 // pred_check_branch
        %119 = sbr.rel (%p116) target = $region12
      $region11: #{tpu_custom_call.1} parent=5 // pred_region
        %s120 = ssub.s32 %s12, 1
        // Predicated region
        $region13: #{tpu_custom_call.1} parent=11 // pred_check
          %p121 = pneg %p59
        $region14: #{tpu_custom_call.1} parent=11 // pred_check_branch
          %123 = sbr.rel (%p121) target = $region16
        $region15: #{tpu_custom_call.1} parent=11 // pred_region
          _
        $region16: #{tpu_custom_call.1} parent=11 // pred_fallthru
          _
        // Predicated region
        $region17: #{tpu_custom_call.1} parent=11 // pred_check
          %p124 = pneg %p80
        $region18: #{tpu_custom_call.1} parent=11 // pred_check_branch
          %126 = sbr.rel (%p124) target = $region20
        $region19: #{tpu_custom_call.1} parent=11 // pred_region
          _
        $region20: #{tpu_custom_call.1} parent=11 // pred_fallthru
          _
      $region12: #{tpu_custom_call.1} parent=5 // pred_fallthru
        _
      %p127 = scmp.lt.s32.totalorder %s12, 2
      // Predicated region
      $region21: #{tpu_custom_call.1} parent=5 // pred_check
        %p128 = pneg %p127
      $region22: #{tpu_custom_call.1} parent=5 // pred_check_branch
        %130 = sbr.rel (%p128) target = $region24
      $region23: #{tpu_custom_call.1} parent=5 // pred_region
        // Predicated region
        $region25: #{tpu_custom_call.1} parent=23 // pred_check
          %p131 = pneg %p32
        $region26: #{tpu_custom_call.1} parent=23 // pred_check_branch
          %133 = sbr.rel (%p131) target = $region28
        $region27: #{tpu_custom_call.1} parent=23 // pred_region
          %s134 = smul.u32 2, %s12
          %p135 = scmp.lt.s32.totalorder %s134, 3
          %s136 = scalar_select %p135, %s134, 3
          %s137 = smul.addr %s136, 4
          %s138 = scalar_lea.vmem %s0, %s137
          %s139 = smul.u32 2, %s12
        $region28: #{tpu_custom_call.1} parent=23 // pred_fallthru
          _
      $region24: #{tpu_custom_call.1} parent=5 // pred_fallthru
        _
      %p140 = scmp.le.s32.totalorder 1, %s12
      %p141 = scmp.lt.s32.totalorder %s12, 3
      %p142 = pnand %p140, %p141
      %p143 = pneg %p142
      // Predicated region
      $region29: #{tpu_custom_call.1} parent=5 // pred_check
        _
      $region30: #{tpu_custom_call.1} parent=5 // pred_check_branch
        %145 = sbr.rel (%p142) target = $region32
      $region31: #{tpu_custom_call.1} parent=5 // pred_region
        %s146 = ssub.s32 %s12, 1
        %s147 = smul.u32 2, %s17
        %p148 = scmp.lt.s32.totalorder %s147, 3
        %s149 = scalar_select %p148, %s147, 3
        %s150 = smul.addr %s149, 4
        %s151 = scalar_lea.vmem %s0, %s150
        %p152 = pneg %p38
        %p153 = pneg %p35
        %p154 = pneg %p59
        %p155 = pneg %p56
        %p156 = pneg %p80
        %p157 = pneg %p77
        %p158 = pneg %p106
        %p159 = pneg %p103
        %s160 = sand.u32 %s93, 1
        %s161 = scalar_lea.sflag [#allocation3], %s160
        %s162 = sand.u32 %s93, 1
        %s163 = smul.addr %s162, 8
        %s164 = scalar_lea.vmem [#allocation2], %s163
        %s165 = smul.u32 2, %s17
        %p166 = scmp.lt.s32.totalorder %s165, 3
        %s167 = scalar_select %p166, %s165, 3
        %s168 = smul.addr %s167, 4
        %s169 = scalar_lea.vmem %s0, %s168
        %s170 = smul.u32 2, %s17
        %s171 = smul.u32 2, %s17
        %v173 = vld [vmem:[%s169] sm:$0xf]
        %v174 = vld [vmem:[%s169 + $0x4] sm:$0xf]
        %v175 = vld [vmem:[%s1] sm:$0xf]
        %v176 = vld [vmem:[%s1 + $0x4] sm:$0xf]
        %v177 = vld [vmem:[%s1 + $0x8] sm:$0xf]
        %v178 = vld [vmem:[%s1 + $0xc] sm:$0xf]
        %v179 = vld [vmem:[%s1 + $0x10] sm:$0xf]
        %v180 = vld [vmem:[%s1 + $0x14] sm:$0xf]
        %v181 = vld [vmem:[%s1 + $0x18] sm:$0xf]
        %v182 = vld [vmem:[%s1 + $0x1c] sm:$0xf]
        %v183 = vld [vmem:[%s1 + $0x20] sm:$0xf]
        %v184 = vld [vmem:[%s1 + $0x24] sm:$0xf]
        %v185 = vld [vmem:[%s1 + $0x28] sm:$0xf]
        %v186 = vld [vmem:[%s1 + $0x2c] sm:$0xf]
        %v187 = vld [vmem:[%s1 + $0x30] sm:$0xf]
        %v188 = vld [vmem:[%s1 + $0x34] sm:$0xf]
        %v189 = vld [vmem:[%s1 + $0x38] sm:$0xf]
        %v190 = vld [vmem:[%s1 + $0x3c] sm:$0xf]
        %v191 = vld [vmem:[%s2] sm:$0x1]
        %v193 = vlaneseq
        %v194 = vshrl.u32 %v193, 7
        %v195 = vsub.s32 0, %v194
        %v196 = vrot.slane %v191, %v195
        %v200 = vunpack.c.l.b16 %v173
        %v201 = vunpack.c.l.b16 %v174
        %v202 = vpack.c.b16 %v201, %v200
        %v220 = vunpack.c.l.b16 %v175
        %v221 = vunpack.c.l.b16 %v176
        %v222 = vunpack.c.l.b16 %v177
        %v223 = vunpack.c.l.b16 %v178
        %v224 = vunpack.c.l.b16 %v179
        %v225 = vunpack.c.l.b16 %v180
        %v226 = vunpack.c.l.b16 %v181
        %v227 = vunpack.c.l.b16 %v182
        %v228 = vunpack.c.l.b16 %v183
        %v229 = vunpack.c.l.b16 %v184
        %v230 = vunpack.c.l.b16 %v185
        %v231 = vunpack.c.l.b16 %v186
        %v232 = vunpack.c.l.b16 %v187
        %v233 = vunpack.c.l.b16 %v188
        %v234 = vunpack.c.l.b16 %v189
        %v235 = vunpack.c.l.b16 %v190
        %v236 = vpack.c.b16 %v221, %v220
        %v237 = vpack.c.b16 %v223, %v222
        %v238 = vpack.c.b16 %v225, %v224
        %v239 = vpack.c.b16 %v227, %v226
        %v240 = vpack.c.b16 %v229, %v228
        %v241 = vpack.c.b16 %v231, %v230
        %v242 = vpack.c.b16 %v233, %v232
        %v243 = vpack.c.b16 %v235, %v234
        %252 = vmatprep.subr.bf16.mxu0 0
        %253 = vmatpush1.bf16.msra.mxu0 %v243
        %254 = vmatprep.subr.bf16.mxu0 0
        %255 = vmatpush1.bf16.msra.mxu0 %v242
        %256 = vmatprep.subr.bf16.mxu0 0
        %257 = vmatpush1.bf16.msra.mxu0 %v241
        %258 = vmatprep.subr.bf16.mxu0 0
        %259 = vmatpush1.bf16.msra.mxu0 %v240
        %260 = vmatprep.subr.bf16.mxu0 0
        %261 = vmatpush1.bf16.msra.mxu0 %v239
        %262 = vmatprep.subr.bf16.mxu0 0
        %263 = vmatpush1.bf16.msra.mxu0 %v238
        %264 = vmatprep.subr.bf16.mxu0 0
        %265 = vmatpush1.bf16.msra.mxu0 %v237
        %266 = vmatprep.subr.bf16.mxu0 0
        %267 = vmatpush1.bf16.msra.mxu0 %v236
        %268 = vmatprep.subr.bf16.mxu0 0
        %269 = vmatpush2.bf16.msra.mxu0 0
        %270 = vmatprep.subr.bf16.mxu0 0
        %271 = vmatpush2.bf16.msra.mxu0 0
        %272 = vmatprep.subr.bf16.mxu0 0
        %273 = vmatpush2.bf16.msra.mxu0 0
        %274 = vmatprep.subr.bf16.mxu0 0
        %275 = vmatpush2.bf16.msra.mxu0 0
        %276 = vmatprep.subr.bf16.mxu0 0
        %277 = vmatpush2.bf16.msra.mxu0 0
        %278 = vmatprep.subr.bf16.mxu0 0
        %279 = vmatpush2.bf16.msra.mxu0 0
        %280 = vmatprep.subr.bf16.mxu0 0
        %281 = vmatpush2.bf16.msra.mxu0 0
        %282 = vmatprep.subr.bf16.mxu0 0
        %283 = vmatpush2.bf16.msra.mxu0 0
        %284 = vmatprep.mubr.bf16.mxu0 0
        %285 = vmatmul.mubr.bf16.gmra.mxu0 %v202
        %v286 = vpop.f32.mrf.mxu0
        %v287 = vadd.f32 %v196, %v286
        %v288 = vpop.f32.mrf.mxu0
        %v289 = vpop.f32.mrf.mxu0
        %v290 = vadd.f32 %v196, %v289
        %v291 = vpop.f32.mrf.mxu0
        %292 = vdwg.mxu0
        %v293 = vpack.c.bf16 %v290, %v287
        %v295 = vunpack.c.l.b16 %v293
        %v296 = vunpack.c.h.b16 %v293
        %v297 = vpack.c.b16 %v295, %v295
        %v298 = vpack.c.b16 %v296, %v296
        %vm301 = vcmask 257024
        %302 = vst.msk [vmem:[%s164] sm:$0xf] %vm301, %v297
        %303 = vst.msk [vmem:[%s164 + $0x4] sm:$0xf] %vm301, %v298
        %s304 = sand.u32 %s93, 1
        %s305 = scalar_lea.sflag [#allocation3], %s304
        %s306 = sand.u32 %s93, 1
        %s307 = smul.addr %s306, 8
        %s308 = scalar_lea.vmem [#allocation2], %s307
        // Predicated region
        $region33: #{tpu_custom_call.1} parent=31 // pred_check
          %p309 = pneg %p103
        $region34: #{tpu_custom_call.1} parent=31 // pred_check_branch
          %311 = sbr.rel (%p309) target = $region36
        $region35: #{tpu_custom_call.1} parent=31 // pred_region
          %s312 = smul.u32 2, %s17
          %s314 = ssub.s32 128, 128
          %315 = vsyncadd %s305, %s314
          %s316 = smul.addr %s312, 64
          %s317 = scalar_lea.hbm %s3, %s316
          %s318 = sshll.u32 %s308, 4
          %s319 = int_to_ptr.vmem [resolvable:$true] %s318
          %324 = dma.vmem_to_hbm [thread:$0]  %s319, 128, %s317, %s305, 64, 64, 4
        $region36: #{tpu_custom_call.1} parent=31 // pred_fallthru
          _
      $region32: #{tpu_custom_call.1} parent=5 // pred_fallthru
        _
      %p325 = scmp.le.s32.totalorder 2, %s12
      // Predicated region
      $region37: #{tpu_custom_call.1} parent=5 // pred_check
        %p326 = pneg %p325
      $region38: #{tpu_custom_call.1} parent=5 // pred_check_branch
        %328 = sbr.rel (%p326) target = $region40
      $region39: #{tpu_custom_call.1} parent=5 // pred_region
        %s329 = ssub.s32 %s12, 2
        // Predicated region
        $region41: #{tpu_custom_call.1} parent=39 // pred_check
          %p330 = pneg %p109
        $region42: #{tpu_custom_call.1} parent=39 // pred_check_branch
          %332 = sbr.rel (%p330) target = $region44
        $region43: #{tpu_custom_call.1} parent=39 // pred_region
          %s333 = sand.u32 %s94, 1
          %s334 = scalar_lea.sflag [#allocation3], %s333
          %s335 = sand.u32 %s94, 1
          %s336 = smul.addr %s335, 8
          %s337 = scalar_lea.vmem [#allocation2], %s336
          %338 = dma.done %s334, 128
        $region44: #{tpu_custom_call.1} parent=39 // pred_fallthru
          _
      $region40: #{tpu_custom_call.1} parent=5 // pred_fallthru
        _
    $region6: #{tpu_custom_call.1} parent=1 // loop_footer
      %s16 = sadd.s32 1, %s12
    $region7: #{tpu_custom_call.1} parent=1 // loop_footer_branch
      %11 = sbr.rel target = $region3
    $region8: #{tpu_custom_call.1} parent=1 // loop_exit
      _
    %339 = vsyncpa [#allocation3], 1
    %s340 = scalar_lea.sflag [#allocation3], 1
    %341 = vsyncpa %s340, 1

</llo_original>
